<compile_context>
chip_gen: v7x
topology: tpu7x:2x2x1
jax: 0.10.0
libtpu: 0.0.40
codegen_flags: <defaults>
</compile_context>

<pallas_src>
import jax
import jax.numpy as jnp
from jax import lax
from jax.experimental import pallas as pl
from jax.experimental.pallas import tpu as pltpu

HIDDEN = 32
INPUT_SIZE = 1
OUT_FEATURES = 2

# Set to jnp.bfloat16 on v6e/v7x to halve MXU passes on the serial per-step chain
# (accumulation stays f32; validate recurrence drift for long T before enabling).
RECURRENT_MATMUL_DTYPE = jnp.float32


def lstm_fc_kernel(x_ref, wih_ref, whh_ref, b_ref, fcw_ref, fcb_ref, out_ref, xw_ref):
    # x_ref   : (T, B, 1)   time-major input
    # wih_ref : (1, 4H)     W_ih^T (input_size == 1)
    # whh_ref : (H, 4H)     W_hh^T
    # b_ref   : (1, 4H)     b_ih + b_hh
    # fcw_ref : (H, OUT)    fc.weight^T
    # fcb_ref : (1, OUT)    fc.bias
    # out_ref : (B, OUT)
    # xw_ref  : (T, B, 4H)  VMEM scratch: hoisted input projection for all timesteps
    T = x_ref.shape[0]
    B = x_ref.shape[1]
    H = whh_ref.shape[0]

    # ---- Hoisted input projection + bias: one vectorized pass over all timesteps. ----
    # (T, B, 1) * (1, 1, 4H) + (1, 1, 4H) -> (T, B, 4H)
    xw_ref[...] = x_ref[...] * wih_ref[...][None] + b_ref[...][None]

    whh = whh_ref[...].astype(RECURRENT_MATMUL_DTYPE)

    def step(t, carry):
        h, c = carry
        # Per-step critical path: one (B, H) x (H, 4H) MXU matmul + an add.
        gates = xw_ref[t] + jnp.dot(h.astype(RECURRENT_MATMUL_DTYPE), whh,
                                    preferred_element_type=jnp.float32)
        # Two full-width EUP dispatches (instead of 4 sigmoid + 1 tanh on narrow slices).
        sig = jax.nn.sigmoid(gates)            # (B, 4H)
        tnh = jnp.tanh(gates)                  # (B, 4H)
        i = sig[:, 0 * H:1 * H]
        f = sig[:, 1 * H:2 * H]
        g = tnh[:, 2 * H:3 * H]
        o = sig[:, 3 * H:4 * H]
        c_new = f * c + i * g
        h_new = o * jnp.tanh(c_new)
        return (h_new, c_new)

    h0 = jnp.zeros((B, H), jnp.float32)
    c0 = jnp.zeros((B, H), jnp.float32)
    # T is a static Python int -> fully unroll the recurrence for scheduler visibility.
    h, _ = lax.fori_loop(0, T, step, (h0, c0), unroll=True)

    # FC epilogue on the final hidden state.
    out_ref[...] = (jnp.dot(h, fcw_ref[...], preferred_element_type=jnp.float32)
                    + fcb_ref[...])


def init_params(key, hidden=HIDDEN, input_size=INPUT_SIZE, out_features=OUT_FEATURES):
    """Deterministic init mimicking PyTorch's uniform(-1/sqrt(H), 1/sqrt(H))."""
    k = 1.0 / jnp.sqrt(jnp.float32(hidden))
    keys = jax.random.split(key, 6)
    w_ih = jax.random.uniform(keys[0], (4 * hidden, input_size), jnp.float32, -k, k)
    w_hh = jax.random.uniform(keys[1], (4 * hidden, hidden), jnp.float32, -k, k)
    b_ih = jax.random.uniform(keys[2], (4 * hidden,), jnp.float32, -k, k)
    b_hh = jax.random.uniform(keys[3], (4 * hidden,), jnp.float32, -k, k)
    fc_w = jax.random.uniform(keys[4], (out_features, hidden), jnp.float32, -k, k)
    fc_b = jax.random.uniform(keys[5], (out_features,), jnp.float32, -k, k)
    return {
        "w_ih_T": w_ih.T,                       # (1, 4H)
        "w_hh_T": w_hh.T,                       # (H, 4H)
        "b": (b_ih + b_hh)[None, :],            # (1, 4H)
        "fc_w_T": fc_w.T,                       # (H, 2)
        "fc_b": fc_b[None, :],                  # (1, 2)
    }


def timeseries_forward(x, params):
    """x: (B, T, 1) float32 (batch_first, like the PyTorch module)."""
    B, T, I = x.shape
    assert I == INPUT_SIZE

    # Fill the sublanes: pad batch to a multiple of 8 so every vreg / MXU pass carries
    # real rows (B=2 would otherwise use 2/8 sublanes). Padded rows are zeros and are
    # sliced away below (the recurrence is row-independent).
    Bp = ((B + 7) // 8) * 8
    x_tm = jnp.transpose(x, (1, 0, 2)).astype(jnp.float32)     # (T, B, 1) time-major
    if Bp != B:
        x_tm = jnp.pad(x_tm, ((0, 0), (0, Bp - B), (0, 0)))    # (T, Bp, 1)

    vmem = lambda: pl.BlockSpec(memory_space=pltpu.MemorySpace.VMEM)
    out = pl.pallas_call(
        lstm_fc_kernel,
        out_shape=jax.ShapeDtypeStruct((Bp, OUT_FEATURES), jnp.float32),
        in_specs=[vmem() for _ in range(6)],
        out_specs=vmem(),
        scratch_shapes=[pltpu.VMEM((T, Bp, 4 * HIDDEN), jnp.float32)],
    )(x_tm, params["w_ih_T"], params["w_hh_T"], params["b"],
      params["fc_w_T"], params["fc_b"])
    return out[:B]


def reference_forward(x, params):
    """Pure-JAX reference of the PyTorch forward, for a correctness check."""
    B, T, _ = x.shape
    H = HIDDEN
    wih = params["w_ih_T"]
    whh = params["w_hh_T"]
    b = params["b"]
    h = jnp.zeros((B, H), jnp.float32)
    c = jnp.zeros((B, H), jnp.float32)
    for t in range(T):
        gates = x[:, t, :] * wih + h @ whh + b
        i = jax.nn.sigmoid(gates[:, 0 * H:1 * H])
        f = jax.nn.sigmoid(gates[:, 1 * H:2 * H])
        g = jnp.tanh(gates[:, 2 * H:3 * H])
        o = jax.nn.sigmoid(gates[:, 3 * H:4 * H])
        c = f * c + i * g
        h = o * jnp.tanh(c)
    return h @ params["fc_w_T"] + params["fc_b"]


if __name__ == "__main__":
    key = jax.random.PRNGKey(0)
    k_param, k_x = jax.random.split(key)

    B, T = 2, 8
    params = init_params(k_param)
    x = jax.random.normal(k_x, (B, T, INPUT_SIZE), jnp.float32)

    out = timeseries_forward(x, params)
    out = jax.block_until_ready(out)

    ref = reference_forward(x, params)
    assert out.shape == (B, OUT_FEATURES)
    assert jnp.allclose(out, ref, atol=1e-5, rtol=1e-5), float(jnp.max(jnp.abs(out - ref)))

    print("KERNEL_OK")
</pallas_src>

<mosaic_0001>
module attributes {stable_mosaic.version = 11 : i64} {
  func.func @lstm_fc_kernel(%arg0: memref<8x8x1xf32, #tpu.memory_space<vmem>>, %arg1: memref<1x128xf32, #tpu.memory_space<vmem>>, %arg2: memref<32x128xf32, #tpu.memory_space<vmem>>, %arg3: memref<1x128xf32, #tpu.memory_space<vmem>>, %arg4: memref<32x2xf32, #tpu.memory_space<vmem>>, %arg5: memref<1x2xf32, #tpu.memory_space<vmem>>, %arg6: memref<8x2xf32, #tpu.memory_space<vmem>>, %arg7: memref<8x8x128xf32, #tpu.memory_space<vmem>>) attributes {dimension_semantics = [], scalar_prefetch = 0 : i64, scratch_operands = 1 : i64, tpu.core_type = #tpu.core_type<tc>} {
    %c0 = arith.constant 0 : index
    %c0_0 = arith.constant 0 : index
    %c0_1 = arith.constant 0 : index
    %0 = vector.load %arg0[%c0, %c0_0, %c0_1] : memref<8x8x1xf32, #tpu.memory_space<vmem>>, vector<8x8x1xf32>
    %c0_2 = arith.constant 0 : index
    %c0_3 = arith.constant 0 : index
    %1 = vector.load %arg1[%c0_2, %c0_3] : memref<1x128xf32, #tpu.memory_space<vmem>>, vector<1x128xf32>
    %2 = vector.shape_cast %1 : vector<1x128xf32> to vector<1x1x128xf32>
    %3 = vector.broadcast %0 : vector<8x8x1xf32> to vector<8x8x128xf32>
    %4 = vector.broadcast %2 : vector<1x1x128xf32> to vector<8x8x128xf32>
    %5 = arith.mulf %3, %4 : vector<8x8x128xf32>
    %c0_4 = arith.constant 0 : index
    %c0_5 = arith.constant 0 : index
    %6 = vector.load %arg3[%c0_4, %c0_5] : memref<1x128xf32, #tpu.memory_space<vmem>>, vector<1x128xf32>
    %7 = vector.shape_cast %6 : vector<1x128xf32> to vector<1x1x128xf32>
    %8 = vector.broadcast %7 : vector<1x1x128xf32> to vector<8x8x128xf32>
    %9 = arith.addf %5, %8 : vector<8x8x128xf32>
    %c0_6 = arith.constant 0 : index
    %c0_7 = arith.constant 0 : index
    %c0_8 = arith.constant 0 : index
    %10 = vector.load %arg7[%c0_6, %c0_7, %c0_8] : memref<8x8x128xf32, #tpu.memory_space<vmem>>, vector<8x8x128xf32>
    tpu.vector_store %arg7[%c0_6, %c0_7, %c0_8], %9 {strides = array<i32>} : memref<8x8x128xf32, #tpu.memory_space<vmem>>, vector<8x8x128xf32>,
    %c0_9 = arith.constant 0 : index
    %c0_10 = arith.constant 0 : index
    %11 = vector.load %arg2[%c0_9, %c0_10] : memref<32x128xf32, #tpu.memory_space<vmem>>, vector<32x128xf32>
    %cst = arith.constant 0.000000e+00 : f32
    %12 = vector.broadcast %cst : f32 to vector<8x32xf32>
    %cst_11 = arith.constant 0.000000e+00 : f32
    %13 = vector.broadcast %cst_11 : f32 to vector<8x32xf32>
    %c0_i32 = arith.constant 0 : i32
    %14 = arith.index_cast %c0_i32 : i32 to index
    %c0_12 = arith.constant 0 : index
    %c0_13 = arith.constant 0 : index
    %15 = vector.load %arg7[%14, %c0_12, %c0_13] : memref<8x8x128xf32, #tpu.memory_space<vmem>>, vector<1x8x128xf32>
    %16 = vector.shape_cast %15 : vector<1x8x128xf32> to vector<8x128xf32>
    %cst_14 = arith.constant dense<0.000000e+00> : vector<8x128xf32>
    %17 = tpu.matmul %12, %11, %cst_14 {dimension_numbers = #tpu.dot_dimension_numbers<[1], [0], [0], [1], [0, 0, 1, 1], [], []>} : vector<8x32xf32>, vector<32x128xf32>, vector<8x128xf32> -> vector<8x128xf32>
    %18 = arith.addf %16, %17 : vector<8x128xf32>
    %19 = arith.negf %18 : vector<8x128xf32>
    %20 = math.exp %19 : vector<8x128xf32>
    %cst_15 = arith.constant 1.000000e+00 : f32
    %21 = vector.broadcast %cst_15 : f32 to vector<8x128xf32>
    %22 = arith.addf %21, %20 : vector<8x128xf32>
    %23 = arith.divf %21, %22 : vector<8x128xf32>
    %24 = math.tanh %18 : vector<8x128xf32>
    %25 = vector.extract_strided_slice %23 {offsets = [0, 0], sizes = [8, 32], strides = [1, 1]} : vector<8x128xf32> to vector<8x32xf32>
    %26 = vector.extract_strided_slice %23 {offsets = [0, 32], sizes = [8, 32], strides = [1, 1]} : vector<8x128xf32> to vector<8x32xf32>
    %27 = vector.extract_strided_slice %24 {offsets = [0, 64], sizes = [8, 32], strides = [1, 1]} : vector<8x128xf32> to vector<8x32xf32>
    %28 = vector.extract_strided_slice %23 {offsets = [0, 96], sizes = [8, 32], strides = [1, 1]} : vector<8x128xf32> to vector<8x32xf32>
    %29 = arith.mulf %26, %13 : vector<8x32xf32>
    %30 = arith.mulf %25, %27 : vector<8x32xf32>
    %31 = arith.addf %29, %30 : vector<8x32xf32>
    %32 = math.tanh %31 : vector<8x32xf32>
    %33 = arith.mulf %28, %32 : vector<8x32xf32>
    %c1_i32 = arith.constant 1 : i32
    %34 = arith.index_cast %c1_i32 : i32 to index
    %c0_16 = arith.constant 0 : index
    %c0_17 = arith.constant 0 : index
    %35 = vector.load %arg7[%34, %c0_16, %c0_17] : memref<8x8x128xf32, #tpu.memory_space<vmem>>, vector<1x8x128xf32>
    %36 = vector.shape_cast %35 : vector<1x8x128xf32> to vector<8x128xf32>
    %cst_18 = arith.constant dense<0.000000e+00> : vector<8x128xf32>
    %37 = tpu.matmul %33, %11, %cst_18 {dimension_numbers = #tpu.dot_dimension_numbers<[1], [0], [0], [1], [0, 0, 1, 1], [], []>} : vector<8x32xf32>, vector<32x128xf32>, vector<8x128xf32> -> vector<8x128xf32>
    %38 = arith.addf %36, %37 : vector<8x128xf32>
    %39 = arith.negf %38 : vector<8x128xf32>
    %40 = math.exp %39 : vector<8x128xf32>
    %cst_19 = arith.constant 1.000000e+00 : f32
    %41 = vector.broadcast %cst_19 : f32 to vector<8x128xf32>
    %42 = arith.addf %41, %40 : vector<8x128xf32>
    %43 = arith.divf %41, %42 : vector<8x128xf32>
    %44 = math.tanh %38 : vector<8x128xf32>
    %45 = vector.extract_strided_slice %43 {offsets = [0, 0], sizes = [8, 32], strides = [1, 1]} : vector<8x128xf32> to vector<8x32xf32>
    %46 = vector.extract_strided_slice %43 {offsets = [0, 32], sizes = [8, 32], strides = [1, 1]} : vector<8x128xf32> to vector<8x32xf32>
    %47 = vector.extract_strided_slice %44 {offsets = [0, 64], sizes = [8, 32], strides = [1, 1]} : vector<8x128xf32> to vector<8x32xf32>
    %48 = vector.extract_strided_slice %43 {offsets = [0, 96], sizes = [8, 32], strides = [1, 1]} : vector<8x128xf32> to vector<8x32xf32>
    %49 = arith.mulf %46, %31 : vector<8x32xf32>
    %50 = arith.mulf %45, %47 : vector<8x32xf32>
    %51 = arith.addf %49, %50 : vector<8x32xf32>
    %52 = math.tanh %51 : vector<8x32xf32>
    %53 = arith.mulf %48, %52 : vector<8x32xf32>
    %c2_i32 = arith.constant 2 : i32
    %54 = arith.index_cast %c2_i32 : i32 to index
    %c0_20 = arith.constant 0 : index
    %c0_21 = arith.constant 0 : index
    %55 = vector.load %arg7[%54, %c0_20, %c0_21] : memref<8x8x128xf32, #tpu.memory_space<vmem>>, vector<1x8x128xf32>
    %56 = vector.shape_cast %55 : vector<1x8x128xf32> to vector<8x128xf32>
    %cst_22 = arith.constant dense<0.000000e+00> : vector<8x128xf32>
    %57 = tpu.matmul %53, %11, %cst_22 {dimension_numbers = #tpu.dot_dimension_numbers<[1], [0], [0], [1], [0, 0, 1, 1], [], []>} : vector<8x32xf32>, vector<32x128xf32>, vector<8x128xf32> -> vector<8x128xf32>
    %58 = arith.addf %56, %57 : vector<8x128xf32>
    %59 = arith.negf %58 : vector<8x128xf32>
    %60 = math.exp %59 : vector<8x128xf32>
    %cst_23 = arith.constant 1.000000e+00 : f32
    %61 = vector.broadcast %cst_23 : f32 to vector<8x128xf32>
    %62 = arith.addf %61, %60 : vector<8x128xf32>
    %63 = arith.divf %61, %62 : vector<8x128xf32>
    %64 = math.tanh %58 : vector<8x128xf32>
    %65 = vector.extract_strided_slice %63 {offsets = [0, 0], sizes = [8, 32], strides = [1, 1]} : vector<8x128xf32> to vector<8x32xf32>
    %66 = vector.extract_strided_slice %63 {offsets = [0, 32], sizes = [8, 32], strides = [1, 1]} : vector<8x128xf32> to vector<8x32xf32>
    %67 = vector.extract_strided_slice %64 {offsets = [0, 64], sizes = [8, 32], strides = [1, 1]} : vector<8x128xf32> to vector<8x32xf32>
    %68 = vector.extract_strided_slice %63 {offsets = [0, 96], sizes = [8, 32], strides = [1, 1]} : vector<8x128xf32> to vector<8x32xf32>
    %69 = arith.mulf %66, %51 : vector<8x32xf32>
    %70 = arith.mulf %65, %67 : vector<8x32xf32>
    %71 = arith.addf %69, %70 : vector<8x32xf32>
    %72 = math.tanh %71 : vector<8x32xf32>
    %73 = arith.mulf %68, %72 : vector<8x32xf32>
    %c3_i32 = arith.constant 3 : i32
    %74 = arith.index_cast %c3_i32 : i32 to index
    %c0_24 = arith.constant 0 : index
    %c0_25 = arith.constant 0 : index
    %75 = vector.load %arg7[%74, %c0_24, %c0_25] : memref<8x8x128xf32, #tpu.memory_space<vmem>>, vector<1x8x128xf32>
    %76 = vector.shape_cast %75 : vector<1x8x128xf32> to vector<8x128xf32>
    %cst_26 = arith.constant dense<0.000000e+00> : vector<8x128xf32>
    %77 = tpu.matmul %73, %11, %cst_26 {dimension_numbers = #tpu.dot_dimension_numbers<[1], [0], [0], [1], [0, 0, 1, 1], [], []>} : vector<8x32xf32>, vector<32x128xf32>, vector<8x128xf32> -> vector<8x128xf32>
    %78 = arith.addf %76, %77 : vector<8x128xf32>
    %79 = arith.negf %78 : vector<8x128xf32>
    %80 = math.exp %79 : vector<8x128xf32>
    %cst_27 = arith.constant 1.000000e+00 : f32
    %81 = vector.broadcast %cst_27 : f32 to vector<8x128xf32>
    %82 = arith.addf %81, %80 : vector<8x128xf32>
    %83 = arith.divf %81, %82 : vector<8x128xf32>
    %84 = math.tanh %78 : vector<8x128xf32>
    %85 = vector.extract_strided_slice %83 {offsets = [0, 0], sizes = [8, 32], strides = [1, 1]} : vector<8x128xf32> to vector<8x32xf32>
    %86 = vector.extract_strided_slice %83 {offsets = [0, 32], sizes = [8, 32], strides = [1, 1]} : vector<8x128xf32> to vector<8x32xf32>
    %87 = vector.extract_strided_slice %84 {offsets = [0, 64], sizes = [8, 32], strides = [1, 1]} : vector<8x128xf32> to vector<8x32xf32>
    %88 = vector.extract_strided_slice %83 {offsets = [0, 96], sizes = [8, 32], strides = [1, 1]} : vector<8x128xf32> to vector<8x32xf32>
    %89 = arith.mulf %86, %71 : vector<8x32xf32>
    %90 = arith.mulf %85, %87 : vector<8x32xf32>
    %91 = arith.addf %89, %90 : vector<8x32xf32>
    %92 = math.tanh %91 : vector<8x32xf32>
    %93 = arith.mulf %88, %92 : vector<8x32xf32>
    %c4_i32 = arith.constant 4 : i32
    %94 = arith.index_cast %c4_i32 : i32 to index
    %c0_28 = arith.constant 0 : index
    %c0_29 = arith.constant 0 : index
    %95 = vector.load %arg7[%94, %c0_28, %c0_29] : memref<8x8x128xf32, #tpu.memory_space<vmem>>, vector<1x8x128xf32>
    %96 = vector.shape_cast %95 : vector<1x8x128xf32> to vector<8x128xf32>
    %cst_30 = arith.constant dense<0.000000e+00> : vector<8x128xf32>
    %97 = tpu.matmul %93, %11, %cst_30 {dimension_numbers = #tpu.dot_dimension_numbers<[1], [0], [0], [1], [0, 0, 1, 1], [], []>} : vector<8x32xf32>, vector<32x128xf32>, vector<8x128xf32> -> vector<8x128xf32>
    %98 = arith.addf %96, %97 : vector<8x128xf32>
    %99 = arith.negf %98 : vector<8x128xf32>
    %100 = math.exp %99 : vector<8x128xf32>
    %cst_31 = arith.constant 1.000000e+00 : f32
    %101 = vector.broadcast %cst_31 : f32 to vector<8x128xf32>
    %102 = arith.addf %101, %100 : vector<8x128xf32>
    %103 = arith.divf %101, %102 : vector<8x128xf32>
    %104 = math.tanh %98 : vector<8x128xf32>
    %105 = vector.extract_strided_slice %103 {offsets = [0, 0], sizes = [8, 32], strides = [1, 1]} : vector<8x128xf32> to vector<8x32xf32>
    %106 = vector.extract_strided_slice %103 {offsets = [0, 32], sizes = [8, 32], strides = [1, 1]} : vector<8x128xf32> to vector<8x32xf32>
    %107 = vector.extract_strided_slice %104 {offsets = [0, 64], sizes = [8, 32], strides = [1, 1]} : vector<8x128xf32> to vector<8x32xf32>
    %108 = vector.extract_strided_slice %103 {offsets = [0, 96], sizes = [8, 32], strides = [1, 1]} : vector<8x128xf32> to vector<8x32xf32>
    %109 = arith.mulf %106, %91 : vector<8x32xf32>
    %110 = arith.mulf %105, %107 : vector<8x32xf32>
    %111 = arith.addf %109, %110 : vector<8x32xf32>
    %112 = math.tanh %111 : vector<8x32xf32>
    %113 = arith.mulf %108, %112 : vector<8x32xf32>
    %c5_i32 = arith.constant 5 : i32
    %114 = arith.index_cast %c5_i32 : i32 to index
    %c0_32 = arith.constant 0 : index
    %c0_33 = arith.constant 0 : index
    %115 = vector.load %arg7[%114, %c0_32, %c0_33] : memref<8x8x128xf32, #tpu.memory_space<vmem>>, vector<1x8x128xf32>
    %116 = vector.shape_cast %115 : vector<1x8x128xf32> to vector<8x128xf32>
    %cst_34 = arith.constant dense<0.000000e+00> : vector<8x128xf32>
    %117 = tpu.matmul %113, %11, %cst_34 {dimension_numbers = #tpu.dot_dimension_numbers<[1], [0], [0], [1], [0, 0, 1, 1], [], []>} : vector<8x32xf32>, vector<32x128xf32>, vector<8x128xf32> -> vector<8x128xf32>
    %118 = arith.addf %116, %117 : vector<8x128xf32>
    %119 = arith.negf %118 : vector<8x128xf32>
    %120 = math.exp %119 : vector<8x128xf32>
    %cst_35 = arith.constant 1.000000e+00 : f32
    %121 = vector.broadcast %cst_35 : f32 to vector<8x128xf32>
    %122 = arith.addf %121, %120 : vector<8x128xf32>
    %123 = arith.divf %121, %122 : vector<8x128xf32>
    %124 = math.tanh %118 : vector<8x128xf32>
    %125 = vector.extract_strided_slice %123 {offsets = [0, 0], sizes = [8, 32], strides = [1, 1]} : vector<8x128xf32> to vector<8x32xf32>
    %126 = vector.extract_strided_slice %123 {offsets = [0, 32], sizes = [8, 32], strides = [1, 1]} : vector<8x128xf32> to vector<8x32xf32>
    %127 = vector.extract_strided_slice %124 {offsets = [0, 64], sizes = [8, 32], strides = [1, 1]} : vector<8x128xf32> to vector<8x32xf32>
    %128 = vector.extract_strided_slice %123 {offsets = [0, 96], sizes = [8, 32], strides = [1, 1]} : vector<8x128xf32> to vector<8x32xf32>
    %129 = arith.mulf %126, %111 : vector<8x32xf32>
    %130 = arith.mulf %125, %127 : vector<8x32xf32>
    %131 = arith.addf %129, %130 : vector<8x32xf32>
    %132 = math.tanh %131 : vector<8x32xf32>
    %133 = arith.mulf %128, %132 : vector<8x32xf32>
    %c6_i32 = arith.constant 6 : i32
    %134 = arith.index_cast %c6_i32 : i32 to index
    %c0_36 = arith.constant 0 : index
    %c0_37 = arith.constant 0 : index
    %135 = vector.load %arg7[%134, %c0_36, %c0_37] : memref<8x8x128xf32, #tpu.memory_space<vmem>>, vector<1x8x128xf32>
    %136 = vector.shape_cast %135 : vector<1x8x128xf32> to vector<8x128xf32>
    %cst_38 = arith.constant dense<0.000000e+00> : vector<8x128xf32>
    %137 = tpu.matmul %133, %11, %cst_38 {dimension_numbers = #tpu.dot_dimension_numbers<[1], [0], [0], [1], [0, 0, 1, 1], [], []>} : vector<8x32xf32>, vector<32x128xf32>, vector<8x128xf32> -> vector<8x128xf32>
    %138 = arith.addf %136, %137 : vector<8x128xf32>
    %139 = arith.negf %138 : vector<8x128xf32>
    %140 = math.exp %139 : vector<8x128xf32>
    %cst_39 = arith.constant 1.000000e+00 : f32
    %141 = vector.broadcast %cst_39 : f32 to vector<8x128xf32>
    %142 = arith.addf %141, %140 : vector<8x128xf32>
    %143 = arith.divf %141, %142 : vector<8x128xf32>
    %144 = math.tanh %138 : vector<8x128xf32>
    %145 = vector.extract_strided_slice %143 {offsets = [0, 0], sizes = [8, 32], strides = [1, 1]} : vector<8x128xf32> to vector<8x32xf32>
    %146 = vector.extract_strided_slice %143 {offsets = [0, 32], sizes = [8, 32], strides = [1, 1]} : vector<8x128xf32> to vector<8x32xf32>
    %147 = vector.extract_strided_slice %144 {offsets = [0, 64], sizes = [8, 32], strides = [1, 1]} : vector<8x128xf32> to vector<8x32xf32>
    %148 = vector.extract_strided_slice %143 {offsets = [0, 96], sizes = [8, 32], strides = [1, 1]} : vector<8x128xf32> to vector<8x32xf32>
    %149 = arith.mulf %146, %131 : vector<8x32xf32>
    %150 = arith.mulf %145, %147 : vector<8x32xf32>
    %151 = arith.addf %149, %150 : vector<8x32xf32>
    %152 = math.tanh %151 : vector<8x32xf32>
    %153 = arith.mulf %148, %152 : vector<8x32xf32>
    %c7_i32 = arith.constant 7 : i32
    %154 = arith.index_cast %c7_i32 : i32 to index
    %c0_40 = arith.constant 0 : index
    %c0_41 = arith.constant 0 : index
    %155 = vector.load %arg7[%154, %c0_40, %c0_41] : memref<8x8x128xf32, #tpu.memory_space<vmem>>, vector<1x8x128xf32>
    %156 = vector.shape_cast %155 : vector<1x8x128xf32> to vector<8x128xf32>
    %cst_42 = arith.constant dense<0.000000e+00> : vector<8x128xf32>
    %157 = tpu.matmul %153, %11, %cst_42 {dimension_numbers = #tpu.dot_dimension_numbers<[1], [0], [0], [1], [0, 0, 1, 1], [], []>} : vector<8x32xf32>, vector<32x128xf32>, vector<8x128xf32> -> vector<8x128xf32>
    %158 = arith.addf %156, %157 : vector<8x128xf32>
    %159 = arith.negf %158 : vector<8x128xf32>
    %160 = math.exp %159 : vector<8x128xf32>
    %cst_43 = arith.constant 1.000000e+00 : f32
    %161 = vector.broadcast %cst_43 : f32 to vector<8x128xf32>
    %162 = arith.addf %161, %160 : vector<8x128xf32>
    %163 = arith.divf %161, %162 : vector<8x128xf32>
    %164 = math.tanh %158 : vector<8x128xf32>
    %165 = vector.extract_strided_slice %163 {offsets = [0, 0], sizes = [8, 32], strides = [1, 1]} : vector<8x128xf32> to vector<8x32xf32>
    %166 = vector.extract_strided_slice %163 {offsets = [0, 32], sizes = [8, 32], strides = [1, 1]} : vector<8x128xf32> to vector<8x32xf32>
    %167 = vector.extract_strided_slice %164 {offsets = [0, 64], sizes = [8, 32], strides = [1, 1]} : vector<8x128xf32> to vector<8x32xf32>
    %168 = vector.extract_strided_slice %163 {offsets = [0, 96], sizes = [8, 32], strides = [1, 1]} : vector<8x128xf32> to vector<8x32xf32>
    %169 = arith.mulf %166, %151 : vector<8x32xf32>
    %170 = arith.mulf %165, %167 : vector<8x32xf32>
    %171 = arith.addf %169, %170 : vector<8x32xf32>
    %172 = math.tanh %171 : vector<8x32xf32>
    %173 = arith.mulf %168, %172 : vector<8x32xf32>
    %c8_i32 = arith.constant 8 : i32
    %c0_44 = arith.constant 0 : index
    %c0_45 = arith.constant 0 : index
    %174 = vector.load %arg4[%c0_44, %c0_45] : memref<32x2xf32, #tpu.memory_space<vmem>>, vector<32x2xf32>
    %cst_46 = arith.constant dense<0.000000e+00> : vector<8x2xf32>
    %175 = tpu.matmul %173, %174, %cst_46 {dimension_numbers = #tpu.dot_dimension_numbers<[1], [0], [0], [1], [0, 0, 1, 1], [], []>} : vector<8x32xf32>, vector<32x2xf32>, vector<8x2xf32> -> vector<8x2xf32>
    %c0_47 = arith.constant 0 : index
    %c0_48 = arith.constant 0 : index
    %176 = vector.load %arg5[%c0_47, %c0_48] : memref<1x2xf32, #tpu.memory_space<vmem>>, vector<1x2xf32>
    %177 = vector.broadcast %176 : vector<1x2xf32> to vector<8x2xf32>
    %178 = arith.addf %175, %177 : vector<8x2xf32>
    %c0_49 = arith.constant 0 : index
    %c0_50 = arith.constant 0 : index
    %179 = vector.load %arg6[%c0_49, %c0_50] : memref<8x2xf32, #tpu.memory_space<vmem>>, vector<8x2xf32>
    tpu.vector_store %arg6[%c0_49, %c0_50], %178 {strides = array<i32>} : memref<8x2xf32, #tpu.memory_space<vmem>>, vector<8x2xf32>,
    return
  }
}

</mosaic_0001>

<llo_original>
// kernel: tpu_custom_call.1
$region0: #{tpu_custom_call.1}
  #allocation0 [shape = 'u32[]', space=smem, size = 0x4, offset = 0x4, fixed_abs, tag = 'smem constant byte address 0x4 - core index']
  #allocation1 [shape = 'u32[144,128]{1,0:T(1,128)}', space=vmem, size = 0x12000, scoped, tag = 'internal scratch']
  #allocation2 [shape = 'f32[8,8,128]{2,1,0:T(8,128)}', space=vmem, size = 0x8000, scoped, tag = 'scratch operand']
  %s0 = inlined_call_operand.vmem [shape: f32[8,8,1], index: 0, kind: input, shape index: {}]
  %s1 = inlined_call_operand.vmem [shape: f32[1,128], index: 1, kind: input, shape index: {}]
  %s2 = inlined_call_operand.vmem [shape: f32[32,128], index: 2, kind: input, shape index: {}]
  %s3 = inlined_call_operand.vmem [shape: f32[1,128], index: 3, kind: input, shape index: {}]
  %s4 = inlined_call_operand.vmem [shape: f32[32,2], index: 4, kind: input, shape index: {}]
  %s5 = inlined_call_operand.vmem [shape: f32[1,2], index: 5, kind: input, shape index: {}]
  %s6 = inlined_call_operand.vmem [shape: f32[8,2], index: 6, kind: output, shape index: {}]
  %s7 = sld [smem:[#allocation0]]
  $region34: #{tpu_custom_call.1} parent=0
    _
  %s9 = ssub.s32 1, %s7
  %s10 = scalar_select 0, %s9, %s7
  // Predicated region
  $region2: #{tpu_custom_call.1} parent=0 // pred_check
    _
  $region3: #{tpu_custom_call.1} parent=0 // pred_check_branch
    %12 = sbr.rel (0) target = $region5
  $region4: #{tpu_custom_call.1} parent=0 // pred_region
    _
  $region5: #{tpu_custom_call.1} parent=0 // pred_fallthru
    _
  // Predicated region
  $region6: #{tpu_custom_call.1} parent=0 // pred_check
    _
  $region7: #{tpu_custom_call.1} parent=0 // pred_check_branch
    %14 = sbr.rel (0) target = $region9
  $region8: #{tpu_custom_call.1} parent=0 // pred_region
    _
  $region9: #{tpu_custom_call.1} parent=0 // pred_fallthru
    _
  // Predicated region
  $region10: #{tpu_custom_call.1} parent=0 // pred_check
    _
  $region11: #{tpu_custom_call.1} parent=0 // pred_check_branch
    %16 = sbr.rel (0) target = $region13
  $region12: #{tpu_custom_call.1} parent=0 // pred_region
    _
  $region13: #{tpu_custom_call.1} parent=0 // pred_fallthru
    _
  // Predicated region
  $region14: #{tpu_custom_call.1} parent=0 // pred_check
    _
  $region15: #{tpu_custom_call.1} parent=0 // pred_check_branch
    %18 = sbr.rel (0) target = $region17
  $region16: #{tpu_custom_call.1} parent=0 // pred_region
    _
  $region17: #{tpu_custom_call.1} parent=0 // pred_fallthru
    _
  // Predicated region
  $region18: #{tpu_custom_call.1} parent=0 // pred_check
    _
  $region19: #{tpu_custom_call.1} parent=0 // pred_check_branch
    %20 = sbr.rel (0) target = $region21
  $region20: #{tpu_custom_call.1} parent=0 // pred_region
    _
  $region21: #{tpu_custom_call.1} parent=0 // pred_fallthru
    _
  // Predicated region
  $region22: #{tpu_custom_call.1} parent=0 // pred_check
    _
  $region23: #{tpu_custom_call.1} parent=0 // pred_check_branch
    %22 = sbr.rel (0) target = $region25
  $region24: #{tpu_custom_call.1} parent=0 // pred_region
    _
  $region25: #{tpu_custom_call.1} parent=0 // pred_fallthru
    _
  %v23 = vld [vmem:[%s0] sm:$0xff]
  %v24 = vld [vmem:[%s0 + $0x8] sm:$0xff]
  %v25 = vld [vmem:[%s0 + $0x10] sm:$0xff]
  %v26 = vld [vmem:[%s0 + $0x18] sm:$0xff]
  %v27 = vld [vmem:[%s0 + $0x20] sm:$0xff]
  %v28 = vld [vmem:[%s0 + $0x28] sm:$0xff]
  %v29 = vld [vmem:[%s0 + $0x30] sm:$0xff]
  %v30 = vld [vmem:[%s0 + $0x38] sm:$0xff]
  %v31 = vld [vmem:[%s1] sm:$0x1]
  %33 = vset.pattern.permute.xlu0 0
  %34 = vperm.xlu0 %33, %v23
  %v35 = vpop.permute.xlu0 %34
  %38 = vset.pattern.permute.xlu0 0
  %39 = vperm.xlu0 %38, %v24
  %v40 = vpop.permute.xlu0 %39
  %43 = vset.pattern.permute.xlu0 0
  %44 = vperm.xlu0 %43, %v25
  %v45 = vpop.permute.xlu0 %44
  %48 = vset.pattern.permute.xlu0 0
  %49 = vperm.xlu0 %48, %v26
  %v50 = vpop.permute.xlu0 %49
  %53 = vset.pattern.permute.xlu0 0
  %54 = vperm.xlu0 %53, %v27
  %v55 = vpop.permute.xlu0 %54
  %58 = vset.pattern.permute.xlu0 0
  %59 = vperm.xlu0 %58, %v28
  %v60 = vpop.permute.xlu0 %59
  %63 = vset.pattern.permute.xlu0 0
  %64 = vperm.xlu0 %63, %v29
  %v65 = vpop.permute.xlu0 %64
  %68 = vset.pattern.permute.xlu0 0
  %69 = vperm.xlu0 %68, %v30
  %v70 = vpop.permute.xlu0 %69
  %v73 = vlaneseq
  %v74 = vshrl.u32 %v73, 7
  %v75 = vsub.s32 0, %v74
  %v76 = vrot.slane %v31, %v75
  %v78 = vmul.f32 %v35, %v76
  %v79 = vmul.f32 %v40, %v76
  %v80 = vmul.f32 %v45, %v76
  %v81 = vmul.f32 %v50, %v76
  %v82 = vmul.f32 %v55, %v76
  %v83 = vmul.f32 %v60, %v76
  %v84 = vmul.f32 %v65, %v76
  %v85 = vmul.f32 %v70, %v76
  %v86 = vld [vmem:[%s3] sm:$0x1]
  %v88 = vlaneseq
  %v89 = vshrl.u32 %v88, 7
  %v90 = vsub.s32 0, %v89
  %v91 = vrot.slane %v86, %v90
  %v93 = vadd.f32 %v78, %v91
  %v94 = vadd.f32 %v79, %v91
  %v95 = vadd.f32 %v80, %v91
  %v96 = vadd.f32 %v81, %v91
  %v97 = vadd.f32 %v82, %v91
  %v98 = vadd.f32 %v83, %v91
  %v99 = vadd.f32 %v84, %v91
  %v100 = vadd.f32 %v85, %v91
  %101 = vst [vmem:[#allocation2] sm:$0xff] %v93
  %102 = vst [vmem:[#allocation2 + $0x8] sm:$0xff] %v94
  %103 = vst [vmem:[#allocation2 + $0x10] sm:$0xff] %v95
  %104 = vst [vmem:[#allocation2 + $0x18] sm:$0xff] %v96
  %105 = vst [vmem:[#allocation2 + $0x20] sm:$0xff] %v97
  %106 = vst [vmem:[#allocation2 + $0x28] sm:$0xff] %v98
  %107 = vst [vmem:[#allocation2 + $0x30] sm:$0xff] %v99
  %108 = vst [vmem:[#allocation2 + $0x38] sm:$0xff] %v100
  %v109 = vld [vmem:[%s2] sm:$0xff]
  %v110 = vld [vmem:[%s2 + $0x8] sm:$0xff]
  %v111 = vld [vmem:[%s2 + $0x10] sm:$0xff]
  %v112 = vld [vmem:[%s2 + $0x18] sm:$0xff]
  %v113 = vld [vmem:[#allocation2] sm:$0xff]
  %vm114 = vcmask 261120
  %v116 = vsel %vm114, 0.0, 0
  %118 = vmatprep.subr.mxu0 0.0
  %119 = vmatpush1.msra.mxu0 %v109
  %120 = vmatprep.subr.mxu0 0.0
  %121 = vmatpush1.msra.mxu0 %v110
  %122 = vmatprep.subr.mxu0 0.0
  %123 = vmatpush1.msra.mxu0 %v111
  %124 = vmatprep.subr.mxu0 0.0
  %125 = vmatpush1.msra.mxu0 %v112
  %126 = vmatprep.subr.mxu0 0.0
  %127 = vmatpush1.msra.mxu0 0.0
  %128 = vmatprep.subr.mxu0 0.0
  %129 = vmatpush1.msra.mxu0 0.0
  %130 = vmatprep.subr.mxu0 0.0
  %131 = vmatpush1.msra.mxu0 0.0
  %132 = vmatprep.subr.mxu0 0.0
  %133 = vmatpush1.msra.mxu0 0.0
  %134 = vmatprep.subr.mxu0 0.0
  %135 = vmatpush1.msra.mxu0 0.0
  %136 = vmatprep.subr.mxu0 0.0
  %137 = vmatpush1.msra.mxu0 0.0
  %138 = vmatprep.subr.mxu0 0.0
  %139 = vmatpush1.msra.mxu0 0.0
  %140 = vmatprep.subr.mxu0 0.0
  %141 = vmatpush1.msra.mxu0 0.0
  %142 = vmatprep.subr.mxu0 0.0
  %143 = vmatpush1.msra.mxu0 0.0
  %144 = vmatprep.subr.mxu0 0.0
  %145 = vmatpush1.msra.mxu0 0.0
  %146 = vmatprep.subr.mxu0 0.0
  %147 = vmatpush1.msra.mxu0 0.0
  %148 = vmatprep.subr.mxu0 0.0
  %149 = vmatpush1.msra.mxu0 0.0
  %150 = vmatprep.subr.mxu0 0.0
  %151 = vmatpush1.msra.mxu0 0.0
  %152 = vmatprep.subr.mxu0 0.0
  %153 = vmatpush1.msra.mxu0 0.0
  %154 = vmatprep.subr.mxu0 0.0
  %155 = vmatpush1.msra.mxu0 0.0
  %156 = vmatprep.subr.mxu0 0.0
  %157 = vmatpush1.msra.mxu0 0.0
  %158 = vmatprep.subr.mxu0 0.0
  %159 = vmatpush1.msra.mxu0 0.0
  %160 = vmatprep.subr.mxu0 0.0
  %161 = vmatpush1.msra.mxu0 0.0
  %162 = vmatprep.subr.mxu0 0.0
  %163 = vmatpush1.msra.mxu0 0.0
  %164 = vmatprep.subr.mxu0 0.0
  %165 = vmatpush1.msra.mxu0 0.0
  %166 = vmatprep.subr.mxu0 0.0
  %167 = vmatpush1.msra.mxu0 0.0
  %168 = vmatprep.subr.mxu0 0.0
  %169 = vmatpush1.msra.mxu0 0.0
  %170 = vmatprep.subr.mxu0 0.0
  %171 = vmatpush1.msra.mxu0 0.0
  %172 = vmatprep.subr.mxu0 0.0
  %173 = vmatpush1.msra.mxu0 0.0
  %174 = vmatprep.subr.mxu0 0.0
  %175 = vmatpush1.msra.mxu0 0.0
  %176 = vmatprep.subr.mxu0 0.0
  %177 = vmatpush1.msra.mxu0 0.0
  %178 = vmatprep.subr.mxu0 0.0
  %179 = vmatpush1.msra.mxu0 0.0
  %180 = vmatprep.subr.mxu0 0.0
  %181 = vmatpush1.msra.mxu0 0.0
  %182 = vmatprep.mubr.f32.mxu0 0.0
  %183 = vmatmul.mubr.f32.gmra.mrb[0].mxu0 %v116
  %v184 = vpop.f32.mrb[0].mxu0
  %v185 = vadd.f32 0.0, %v184
  %v186 = vpop.f32.mrb[0].mxu0
  %187 = vdwg.mxu0
  %v188 = vadd.f32 %v113, %v185
  %v189 = vxor.u32 %v188, 2147483648
  %v190 = vmul.f32 %v189, 1.442695
  %v191 = vpow.pop %v190
  %v192 = vadd.f32 %v191, 1.0
  %v193 = vrcp.pop %v192
  %v194 = vmul.f32 1.0, %v193
  %v195 = vtanh.pop %v188
  %v196 = vmul.f32 %v194, 0.0
  %198 = vrot.lane.b32.xlu0 %v195, 64
  %v199 = vpop.permute.xlu0 %198
  %v201 = vmul.f32 %v194, %v199
  %203 = vrot.lane.b32.xlu0 %v201, 32
  %v204 = vpop.permute.xlu0 %203
  %v206 = vadd.f32 %v196, %v204
  %v207 = vtanh.pop %v206
  %209 = vrot.lane.b32.xlu0 %v207, 64
  %v210 = vpop.permute.xlu0 %209
  %v212 = vmul.f32 %v194, %v210
  %s213 = scalar_lea.vmem [#allocation2], 8
  %v214 = vld [vmem:[%s213] sm:$0xff]
  %216 = vrot.lane.b32.xlu0 %v212, 32
  %v217 = vpop.permute.xlu0 %216
  %v218 = vsel %vm114, %v217, 0
  %220 = vmatprep.subr.mxu0 0.0
  %221 = vmatpush1.msra.mxu0 %v109
  %222 = vmatprep.subr.mxu0 0.0
  %223 = vmatpush1.msra.mxu0 %v110
  %224 = vmatprep.subr.mxu0 0.0
  %225 = vmatpush1.msra.mxu0 %v111
  %226 = vmatprep.subr.mxu0 0.0
  %227 = vmatpush1.msra.mxu0 %v112
  %228 = vmatprep.subr.mxu0 0.0
  %229 = vmatpush1.msra.mxu0 0.0
  %230 = vmatprep.subr.mxu0 0.0
  %231 = vmatpush1.msra.mxu0 0.0
  %232 = vmatprep.subr.mxu0 0.0
  %233 = vmatpush1.msra.mxu0 0.0
  %234 = vmatprep.subr.mxu0 0.0
  %235 = vmatpush1.msra.mxu0 0.0
  %236 = vmatprep.subr.mxu0 0.0
  %237 = vmatpush1.msra.mxu0 0.0
  %238 = vmatprep.subr.mxu0 0.0
  %239 = vmatpush1.msra.mxu0 0.0
  %240 = vmatprep.subr.mxu0 0.0
  %241 = vmatpush1.msra.mxu0 0.0
  %242 = vmatprep.subr.mxu0 0.0
  %243 = vmatpush1.msra.mxu0 0.0
  %244 = vmatprep.subr.mxu0 0.0
  %245 = vmatpush1.msra.mxu0 0.0
  %246 = vmatprep.subr.mxu0 0.0
  %247 = vmatpush1.msra.mxu0 0.0
  %248 = vmatprep.subr.mxu0 0.0
  %249 = vmatpush1.msra.mxu0 0.0
  %250 = vmatprep.subr.mxu0 0.0
  %251 = vmatpush1.msra.mxu0 0.0
  %252 = vmatprep.subr.mxu0 0.0
  %253 = vmatpush1.msra.mxu0 0.0
  %254 = vmatprep.subr.mxu0 0.0
  %255 = vmatpush1.msra.mxu0 0.0
  %256 = vmatprep.subr.mxu0 0.0
  %257 = vmatpush1.msra.mxu0 0.0
  %258 = vmatprep.subr.mxu0 0.0
  %259 = vmatpush1.msra.mxu0 0.0
  %260 = vmatprep.subr.mxu0 0.0
  %261 = vmatpush1.msra.mxu0 0.0
  %262 = vmatprep.subr.mxu0 0.0
  %263 = vmatpush1.msra.mxu0 0.0
  %264 = vmatprep.subr.mxu0 0.0
  %265 = vmatpush1.msra.mxu0 0.0
  %266 = vmatprep.subr.mxu0 0.0
  %267 = vmatpush1.msra.mxu0 0.0
  %268 = vmatprep.subr.mxu0 0.0
  %269 = vmatpush1.msra.mxu0 0.0
  %270 = vmatprep.subr.mxu0 0.0
  %271 = vmatpush1.msra.mxu0 0.0
  %272 = vmatprep.subr.mxu0 0.0
  %273 = vmatpush1.msra.mxu0 0.0
  %274 = vmatprep.subr.mxu0 0.0
  %275 = vmatpush1.msra.mxu0 0.0
  %276 = vmatprep.subr.mxu0 0.0
  %277 = vmatpush1.msra.mxu0 0.0
  %278 = vmatprep.subr.mxu0 0.0
  %279 = vmatpush1.msra.mxu0 0.0
  %280 = vmatprep.subr.mxu0 0.0
  %281 = vmatpush1.msra.mxu0 0.0
  %282 = vmatprep.subr.mxu0 0.0
  %283 = vmatpush1.msra.mxu0 0.0
  %284 = vmatprep.mubr.f32.mxu0 0.0
  %285 = vmatmul.mubr.f32.gmra.mrb[0].mxu0 %v218
  %v286 = vpop.f32.mrb[0].mxu0
  %v287 = vadd.f32 0.0, %v286
  %v288 = vpop.f32.mrb[0].mxu0
  %289 = vdwg.mxu0
  %v290 = vadd.f32 %v214, %v287
  %v291 = vxor.u32 %v290, 2147483648
  %v292 = vmul.f32 %v291, 1.442695
  %v293 = vpow.pop %v292
  %v294 = vadd.f32 %v293, 1.0
  %v295 = vrcp.pop %v294
  %v296 = vmul.f32 1.0, %v295
  %v297 = vtanh.pop %v290
  %v298 = vmul.f32 %v296, %v206
  %300 = vrot.lane.b32.xlu0 %v297, 64
  %v301 = vpop.permute.xlu0 %300
  %v303 = vmul.f32 %v296, %v301
  %305 = vrot.lane.b32.xlu0 %v303, 32
  %v306 = vpop.permute.xlu0 %305
  %v308 = vadd.f32 %v298, %v306
  %v309 = vtanh.pop %v308
  %311 = vrot.lane.b32.xlu0 %v309, 64
  %v312 = vpop.permute.xlu0 %311
  %v314 = vmul.f32 %v296, %v312
  %s315 = scalar_lea.vmem [#allocation2], 16
  %v316 = vld [vmem:[%s315] sm:$0xff]
  %318 = vrot.lane.b32.xlu0 %v314, 32
  %v319 = vpop.permute.xlu0 %318
  %v320 = vsel %vm114, %v319, 0
  %322 = vmatprep.subr.mxu0 0.0
  %323 = vmatpush1.msra.mxu0 %v109
  %324 = vmatprep.subr.mxu0 0.0
  %325 = vmatpush1.msra.mxu0 %v110
  %326 = vmatprep.subr.mxu0 0.0
  %327 = vmatpush1.msra.mxu0 %v111
  %328 = vmatprep.subr.mxu0 0.0
  %329 = vmatpush1.msra.mxu0 %v112
  %330 = vmatprep.subr.mxu0 0.0
  %331 = vmatpush1.msra.mxu0 0.0
  %332 = vmatprep.subr.mxu0 0.0
  %333 = vmatpush1.msra.mxu0 0.0
  %334 = vmatprep.subr.mxu0 0.0
  %335 = vmatpush1.msra.mxu0 0.0
  %336 = vmatprep.subr.mxu0 0.0
  %337 = vmatpush1.msra.mxu0 0.0
  %338 = vmatprep.subr.mxu0 0.0
  %339 = vmatpush1.msra.mxu0 0.0
  %340 = vmatprep.subr.mxu0 0.0
  %341 = vmatpush1.msra.mxu0 0.0
  %342 = vmatprep.subr.mxu0 0.0
  %343 = vmatpush1.msra.mxu0 0.0
  %344 = vmatprep.subr.mxu0 0.0
  %345 = vmatpush1.msra.mxu0 0.0
  %346 = vmatprep.subr.mxu0 0.0
  %347 = vmatpush1.msra.mxu0 0.0
  %348 = vmatprep.subr.mxu0 0.0
  %349 = vmatpush1.msra.mxu0 0.0
  %350 = vmatprep.subr.mxu0 0.0
  %351 = vmatpush1.msra.mxu0 0.0
  %352 = vmatprep.subr.mxu0 0.0
  %353 = vmatpush1.msra.mxu0 0.0
  %354 = vmatprep.subr.mxu0 0.0
  %355 = vmatpush1.msra.mxu0 0.0
  %356 = vmatprep.subr.mxu0 0.0
  %357 = vmatpush1.msra.mxu0 0.0
  %358 = vmatprep.subr.mxu0 0.0
  %359 = vmatpush1.msra.mxu0 0.0
  %360 = vmatprep.subr.mxu0 0.0
  %361 = vmatpush1.msra.mxu0 0.0
  %362 = vmatprep.subr.mxu0 0.0
  %363 = vmatpush1.msra.mxu0 0.0
  %364 = vmatprep.subr.mxu0 0.0
  %365 = vmatpush1.msra.mxu0 0.0
  %366 = vmatprep.subr.mxu0 0.0
  %367 = vmatpush1.msra.mxu0 0.0
  %368 = vmatprep.subr.mxu0 0.0
  %369 = vmatpush1.msra.mxu0 0.0
  %370 = vmatprep.subr.mxu0 0.0
  %371 = vmatpush1.msra.mxu0 0.0
  %372 = vmatprep.subr.mxu0 0.0
  %373 = vmatpush1.msra.mxu0 0.0
  %374 = vmatprep.subr.mxu0 0.0
  %375 = vmatpush1.msra.mxu0 0.0
  %376 = vmatprep.subr.mxu0 0.0
  %377 = vmatpush1.msra.mxu0 0.0
  %378 = vmatprep.subr.mxu0 0.0
  %379 = vmatpush1.msra.mxu0 0.0
  %380 = vmatprep.subr.mxu0 0.0
  %381 = vmatpush1.msra.mxu0 0.0
  %382 = vmatprep.subr.mxu0 0.0
  %383 = vmatpush1.msra.mxu0 0.0
  %384 = vmatprep.subr.mxu0 0.0
  %385 = vmatpush1.msra.mxu0 0.0
  %386 = vmatprep.mubr.f32.mxu0 0.0
  %387 = vmatmul.mubr.f32.gmra.mrb[0].mxu0 %v320
  %v388 = vpop.f32.mrb[0].mxu0
  %v389 = vadd.f32 0.0, %v388
  %v390 = vpop.f32.mrb[0].mxu0
  %391 = vdwg.mxu0
  %v392 = vadd.f32 %v316, %v389
  %v393 = vxor.u32 %v392, 2147483648
  %v394 = vmul.f32 %v393, 1.442695
  %v395 = vpow.pop %v394
  %v396 = vadd.f32 %v395, 1.0
  %v397 = vrcp.pop %v396
  %v398 = vmul.f32 1.0, %v397
  %v399 = vtanh.pop %v392
  %v400 = vmul.f32 %v398, %v308
  %402 = vrot.lane.b32.xlu0 %v399, 64
  %v403 = vpop.permute.xlu0 %402
  %v405 = vmul.f32 %v398, %v403
  %407 = vrot.lane.b32.xlu0 %v405, 32
  %v408 = vpop.permute.xlu0 %407
  %v410 = vadd.f32 %v400, %v408
  %v411 = vtanh.pop %v410
  %413 = vrot.lane.b32.xlu0 %v411, 64
  %v414 = vpop.permute.xlu0 %413
  %v416 = vmul.f32 %v398, %v414
  %s417 = scalar_lea.vmem [#allocation2], 24
  %v418 = vld [vmem:[%s417] sm:$0xff]
  %420 = vrot.lane.b32.xlu0 %v416, 32
  %v421 = vpop.permute.xlu0 %420
  %v422 = vsel %vm114, %v421, 0
  %424 = vmatprep.subr.mxu0 0.0
  %425 = vmatpush1.msra.mxu0 %v109
  %426 = vmatprep.subr.mxu0 0.0
  %427 = vmatpush1.msra.mxu0 %v110
  %428 = vmatprep.subr.mxu0 0.0
  %429 = vmatpush1.msra.mxu0 %v111
  %430 = vmatprep.subr.mxu0 0.0
  %431 = vmatpush1.msra.mxu0 %v112
  %432 = vmatprep.subr.mxu0 0.0
  %433 = vmatpush1.msra.mxu0 0.0
  %434 = vmatprep.subr.mxu0 0.0
  %435 = vmatpush1.msra.mxu0 0.0
  %436 = vmatprep.subr.mxu0 0.0
  %437 = vmatpush1.msra.mxu0 0.0
  %438 = vmatprep.subr.mxu0 0.0
  %439 = vmatpush1.msra.mxu0 0.0
  %440 = vmatprep.subr.mxu0 0.0
  %441 = vmatpush1.msra.mxu0 0.0
  %442 = vmatprep.subr.mxu0 0.0
  %443 = vmatpush1.msra.mxu0 0.0
  %444 = vmatprep.subr.mxu0 0.0
  %445 = vmatpush1.msra.mxu0 0.0
  %446 = vmatprep.subr.mxu0 0.0
  %447 = vmatpush1.msra.mxu0 0.0
  %448 = vmatprep.subr.mxu0 0.0
  %449 = vmatpush1.msra.mxu0 0.0
  %450 = vmatprep.subr.mxu0 0.0
  %451 = vmatpush1.msra.mxu0 0.0
  %452 = vmatprep.subr.mxu0 0.0
  %453 = vmatpush1.msra.mxu0 0.0
  %454 = vmatprep.subr.mxu0 0.0
  %455 = vmatpush1.msra.mxu0 0.0
  %456 = vmatprep.subr.mxu0 0.0
  %457 = vmatpush1.msra.mxu0 0.0
  %458 = vmatprep.subr.mxu0 0.0
  %459 = vmatpush1.msra.mxu0 0.0
  %460 = vmatprep.subr.mxu0 0.0
  %461 = vmatpush1.msra.mxu0 0.0
  %462 = vmatprep.subr.mxu0 0.0
  %463 = vmatpush1.msra.mxu0 0.0
  %464 = vmatprep.subr.mxu0 0.0
  %465 = vmatpush1.msra.mxu0 0.0
  %466 = vmatprep.subr.mxu0 0.0
  %467 = vmatpush1.msra.mxu0 0.0
  %468 = vmatprep.subr.mxu0 0.0
  %469 = vmatpush1.msra.mxu0 0.0
  %470 = vmatprep.subr.mxu0 0.0
  %471 = vmatpush1.msra.mxu0 0.0
  %472 = vmatprep.subr.mxu0 0.0
  %473 = vmatpush1.msra.mxu0 0.0
  %474 = vmatprep.subr.mxu0 0.0
  %475 = vmatpush1.msra.mxu0 0.0
  %476 = vmatprep.subr.mxu0 0.0
  %477 = vmatpush1.msra.mxu0 0.0
  %478 = vmatprep.subr.mxu0 0.0
  %479 = vmatpush1.msra.mxu0 0.0
  %480 = vmatprep.subr.mxu0 0.0
  %481 = vmatpush1.msra.mxu0 0.0
  %482 = vmatprep.subr.mxu0 0.0
  %483 = vmatpush1.msra.mxu0 0.0
  %484 = vmatprep.subr.mxu0 0.0
  %485 = vmatpush1.msra.mxu0 0.0
  %486 = vmatprep.subr.mxu0 0.0
  %487 = vmatpush1.msra.mxu0 0.0
  %488 = vmatprep.mubr.f32.mxu0 0.0
  %489 = vmatmul.mubr.f32.gmra.mrb[0].mxu0 %v422
  %v490 = vpop.f32.mrb[0].mxu0
  %v491 = vadd.f32 0.0, %v490
  %v492 = vpop.f32.mrb[0].mxu0
  %493 = vdwg.mxu0
  %v494 = vadd.f32 %v418, %v491
  %v495 = vxor.u32 %v494, 2147483648
  %v496 = vmul.f32 %v495, 1.442695
  %v497 = vpow.pop %v496
  %v498 = vadd.f32 %v497, 1.0
  %v499 = vrcp.pop %v498
  %v500 = vmul.f32 1.0, %v499
  %v501 = vtanh.pop %v494
  %v502 = vmul.f32 %v500, %v410
  %504 = vrot.lane.b32.xlu0 %v501, 64
  %v505 = vpop.permute.xlu0 %504
  %v507 = vmul.f32 %v500, %v505
  %509 = vrot.lane.b32.xlu0 %v507, 32
  %v510 = vpop.permute.xlu0 %509
  %v512 = vadd.f32 %v502, %v510
  %v513 = vtanh.pop %v512
  %515 = vrot.lane.b32.xlu0 %v513, 64
  %v516 = vpop.permute.xlu0 %515
  %v518 = vmul.f32 %v500, %v516
  %s519 = scalar_lea.vmem [#allocation2], 32
  %v520 = vld [vmem:[%s519] sm:$0xff]
  %522 = vrot.lane.b32.xlu0 %v518, 32
  %v523 = vpop.permute.xlu0 %522
  %v524 = vsel %vm114, %v523, 0
  %526 = vmatprep.subr.mxu0 0.0
  %527 = vmatpush1.msra.mxu0 %v109
  %528 = vmatprep.subr.mxu0 0.0
  %529 = vmatpush1.msra.mxu0 %v110
  %530 = vmatprep.subr.mxu0 0.0
  %531 = vmatpush1.msra.mxu0 %v111
  %532 = vmatprep.subr.mxu0 0.0
  %533 = vmatpush1.msra.mxu0 %v112
  %534 = vmatprep.subr.mxu0 0.0
  %535 = vmatpush1.msra.mxu0 0.0
  %536 = vmatprep.subr.mxu0 0.0
  %537 = vmatpush1.msra.mxu0 0.0
  %538 = vmatprep.subr.mxu0 0.0
  %539 = vmatpush1.msra.mxu0 0.0
  %540 = vmatprep.subr.mxu0 0.0
  %541 = vmatpush1.msra.mxu0 0.0
  %542 = vmatprep.subr.mxu0 0.0
  %543 = vmatpush1.msra.mxu0 0.0
  %544 = vmatprep.subr.mxu0 0.0
  %545 = vmatpush1.msra.mxu0 0.0
  %546 = vmatprep.subr.mxu0 0.0
  %547 = vmatpush1.msra.mxu0 0.0
  %548 = vmatprep.subr.mxu0 0.0
  %549 = vmatpush1.msra.mxu0 0.0
  %550 = vmatprep.subr.mxu0 0.0
  %551 = vmatpush1.msra.mxu0 0.0
  %552 = vmatprep.subr.mxu0 0.0
  %553 = vmatpush1.msra.mxu0 0.0
  %554 = vmatprep.subr.mxu0 0.0
  %555 = vmatpush1.msra.mxu0 0.0
  %556 = vmatprep.subr.mxu0 0.0
  %557 = vmatpush1.msra.mxu0 0.0
  %558 = vmatprep.subr.mxu0 0.0
  %559 = vmatpush1.msra.mxu0 0.0
  %560 = vmatprep.subr.mxu0 0.0
  %561 = vmatpush1.msra.mxu0 0.0
  %562 = vmatprep.subr.mxu0 0.0
  %563 = vmatpush1.msra.mxu0 0.0
  %564 = vmatprep.subr.mxu0 0.0
  %565 = vmatpush1.msra.mxu0 0.0
  %566 = vmatprep.subr.mxu0 0.0
  %567 = vmatpush1.msra.mxu0 0.0
  %568 = vmatprep.subr.mxu0 0.0
  %569 = vmatpush1.msra.mxu0 0.0
  %570 = vmatprep.subr.mxu0 0.0
  %571 = vmatpush1.msra.mxu0 0.0
  %572 = vmatprep.subr.mxu0 0.0
  %573 = vmatpush1.msra.mxu0 0.0
  %574 = vmatprep.subr.mxu0 0.0
  %575 = vmatpush1.msra.mxu0 0.0
  %576 = vmatprep.subr.mxu0 0.0
  %577 = vmatpush1.msra.mxu0 0.0
  %578 = vmatprep.subr.mxu0 0.0
  %579 = vmatpush1.msra.mxu0 0.0
  %580 = vmatprep.subr.mxu0 0.0
  %581 = vmatpush1.msra.mxu0 0.0
  %582 = vmatprep.subr.mxu0 0.0
  %583 = vmatpush1.msra.mxu0 0.0
  %584 = vmatprep.subr.mxu0 0.0
  %585 = vmatpush1.msra.mxu0 0.0
  %586 = vmatprep.subr.mxu0 0.0
  %587 = vmatpush1.msra.mxu0 0.0
  %588 = vmatprep.subr.mxu0 0.0
  %589 = vmatpush1.msra.mxu0 0.0
  %590 = vmatprep.mubr.f32.mxu0 0.0
  %591 = vmatmul.mubr.f32.gmra.mrb[0].mxu0 %v524
  %v592 = vpop.f32.mrb[0].mxu0
  %v593 = vadd.f32 0.0, %v592
  %v594 = vpop.f32.mrb[0].mxu0
  %595 = vdwg.mxu0
  %v596 = vadd.f32 %v520, %v593
  %v597 = vxor.u32 %v596, 2147483648
  %v598 = vmul.f32 %v597, 1.442695
  %v599 = vpow.pop %v598
  %v600 = vadd.f32 %v599, 1.0
  %v601 = vrcp.pop %v600
  %v602 = vmul.f32 1.0, %v601
  %v603 = vtanh.pop %v596
  %v604 = vmul.f32 %v602, %v512
  %606 = vrot.lane.b32.xlu0 %v603, 64
  %v607 = vpop.permute.xlu0 %606
  %v609 = vmul.f32 %v602, %v607
  %611 = vrot.lane.b32.xlu0 %v609, 32
  %v612 = vpop.permute.xlu0 %611
  %v614 = vadd.f32 %v604, %v612
  %v615 = vtanh.pop %v614
  %617 = vrot.lane.b32.xlu0 %v615, 64
  %v618 = vpop.permute.xlu0 %617
  %v620 = vmul.f32 %v602, %v618
  %s621 = scalar_lea.vmem [#allocation2], 40
  %v622 = vld [vmem:[%s621] sm:$0xff]
  %624 = vrot.lane.b32.xlu0 %v620, 32
  %v625 = vpop.permute.xlu0 %624
  %v626 = vsel %vm114, %v625, 0
  %628 = vmatprep.subr.mxu0 0.0
  %629 = vmatpush1.msra.mxu0 %v109
  %630 = vmatprep.subr.mxu0 0.0
  %631 = vmatpush1.msra.mxu0 %v110
  %632 = vmatprep.subr.mxu0 0.0
  %633 = vmatpush1.msra.mxu0 %v111
  %634 = vmatprep.subr.mxu0 0.0
  %635 = vmatpush1.msra.mxu0 %v112
  %636 = vmatprep.subr.mxu0 0.0
  %637 = vmatpush1.msra.mxu0 0.0
  %638 = vmatprep.subr.mxu0 0.0
  %639 = vmatpush1.msra.mxu0 0.0
  %640 = vmatprep.subr.mxu0 0.0
  %641 = vmatpush1.msra.mxu0 0.0
  %642 = vmatprep.subr.mxu0 0.0
  %643 = vmatpush1.msra.mxu0 0.0
  %644 = vmatprep.subr.mxu0 0.0
  %645 = vmatpush1.msra.mxu0 0.0
  %646 = vmatprep.subr.mxu0 0.0
  %647 = vmatpush1.msra.mxu0 0.0
  %648 = vmatprep.subr.mxu0 0.0
  %649 = vmatpush1.msra.mxu0 0.0
  %650 = vmatprep.subr.mxu0 0.0
  %651 = vmatpush1.msra.mxu0 0.0
  %652 = vmatprep.subr.mxu0 0.0
  %653 = vmatpush1.msra.mxu0 0.0
  %654 = vmatprep.subr.mxu0 0.0
  %655 = vmatpush1.msra.mxu0 0.0
  %656 = vmatprep.subr.mxu0 0.0
  %657 = vmatpush1.msra.mxu0 0.0
  %658 = vmatprep.subr.mxu0 0.0
  %659 = vmatpush1.msra.mxu0 0.0
  %660 = vmatprep.subr.mxu0 0.0
  %661 = vmatpush1.msra.mxu0 0.0
  %662 = vmatprep.subr.mxu0 0.0
  %663 = vmatpush1.msra.mxu0 0.0
  %664 = vmatprep.subr.mxu0 0.0
  %665 = vmatpush1.msra.mxu0 0.0
  %666 = vmatprep.subr.mxu0 0.0
  %667 = vmatpush1.msra.mxu0 0.0
  %668 = vmatprep.subr.mxu0 0.0
  %669 = vmatpush1.msra.mxu0 0.0
  %670 = vmatprep.subr.mxu0 0.0
  %671 = vmatpush1.msra.mxu0 0.0
  %672 = vmatprep.subr.mxu0 0.0
  %673 = vmatpush1.msra.mxu0 0.0
  %674 = vmatprep.subr.mxu0 0.0
  %675 = vmatpush1.msra.mxu0 0.0
  %676 = vmatprep.subr.mxu0 0.0
  %677 = vmatpush1.msra.mxu0 0.0
  %678 = vmatprep.subr.mxu0 0.0
  %679 = vmatpush1.msra.mxu0 0.0
  %680 = vmatprep.subr.mxu0 0.0
  %681 = vmatpush1.msra.mxu0 0.0
  %682 = vmatprep.subr.mxu0 0.0
  %683 = vmatpush1.msra.mxu0 0.0
  %684 = vmatprep.subr.mxu0 0.0
  %685 = vmatpush1.msra.mxu0 0.0
  %686 = vmatprep.subr.mxu0 0.0
  %687 = vmatpush1.msra.mxu0 0.0
  %688 = vmatprep.subr.mxu0 0.0
  %689 = vmatpush1.msra.mxu0 0.0
  %690 = vmatprep.subr.mxu0 0.0
  %691 = vmatpush1.msra.mxu0 0.0
  %692 = vmatprep.mubr.f32.mxu0 0.0
  %693 = vmatmul.mubr.f32.gmra.mrb[0].mxu0 %v626
  %v694 = vpop.f32.mrb[0].mxu0
  %v695 = vadd.f32 0.0, %v694
  %v696 = vpop.f32.mrb[0].mxu0
  %697 = vdwg.mxu0
  %v698 = vadd.f32 %v622, %v695
  %v699 = vxor.u32 %v698, 2147483648
  %v700 = vmul.f32 %v699, 1.442695
  %v701 = vpow.pop %v700
  %v702 = vadd.f32 %v701, 1.0
  %v703 = vrcp.pop %v702
  %v704 = vmul.f32 1.0, %v703
  %v705 = vtanh.pop %v698
  %v706 = vmul.f32 %v704, %v614
  %708 = vrot.lane.b32.xlu0 %v705, 64
  %v709 = vpop.permute.xlu0 %708
  %v711 = vmul.f32 %v704, %v709
  %713 = vrot.lane.b32.xlu0 %v711, 32
  %v714 = vpop.permute.xlu0 %713
  %v716 = vadd.f32 %v706, %v714
  %v717 = vtanh.pop %v716
  %719 = vrot.lane.b32.xlu0 %v717, 64
  %v720 = vpop.permute.xlu0 %719
  %v722 = vmul.f32 %v704, %v720
  %s723 = scalar_lea.vmem [#allocation2], 48
  %v724 = vld [vmem:[%s723] sm:$0xff]
  %726 = vrot.lane.b32.xlu0 %v722, 32
  %v727 = vpop.permute.xlu0 %726
  %v728 = vsel %vm114, %v727, 0
  %730 = vmatprep.subr.mxu0 0.0
  %731 = vmatpush1.msra.mxu0 %v109
  %732 = vmatprep.subr.mxu0 0.0
  %733 = vmatpush1.msra.mxu0 %v110
  %734 = vmatprep.subr.mxu0 0.0
  %735 = vmatpush1.msra.mxu0 %v111
  %736 = vmatprep.subr.mxu0 0.0
  %737 = vmatpush1.msra.mxu0 %v112
  %738 = vmatprep.subr.mxu0 0.0
  %739 = vmatpush1.msra.mxu0 0.0
  %740 = vmatprep.subr.mxu0 0.0
  %741 = vmatpush1.msra.mxu0 0.0
  %742 = vmatprep.subr.mxu0 0.0
  %743 = vmatpush1.msra.mxu0 0.0
  %744 = vmatprep.subr.mxu0 0.0
  %745 = vmatpush1.msra.mxu0 0.0
  %746 = vmatprep.subr.mxu0 0.0
  %747 = vmatpush1.msra.mxu0 0.0
  %748 = vmatprep.subr.mxu0 0.0
  %749 = vmatpush1.msra.mxu0 0.0
  %750 = vmatprep.subr.mxu0 0.0
  %751 = vmatpush1.msra.mxu0 0.0
  %752 = vmatprep.subr.mxu0 0.0
  %753 = vmatpush1.msra.mxu0 0.0
  %754 = vmatprep.subr.mxu0 0.0
  %755 = vmatpush1.msra.mxu0 0.0
  %756 = vmatprep.subr.mxu0 0.0
  %757 = vmatpush1.msra.mxu0 0.0
  %758 = vmatprep.subr.mxu0 0.0
  %759 = vmatpush1.msra.mxu0 0.0
  %760 = vmatprep.subr.mxu0 0.0
  %761 = vmatpush1.msra.mxu0 0.0
  %762 = vmatprep.subr.mxu0 0.0
  %763 = vmatpush1.msra.mxu0 0.0
  %764 = vmatprep.subr.mxu0 0.0
  %765 = vmatpush1.msra.mxu0 0.0
  %766 = vmatprep.subr.mxu0 0.0
  %767 = vmatpush1.msra.mxu0 0.0
  %768 = vmatprep.subr.mxu0 0.0
  %769 = vmatpush1.msra.mxu0 0.0
  %770 = vmatprep.subr.mxu0 0.0
  %771 = vmatpush1.msra.mxu0 0.0
  %772 = vmatprep.subr.mxu0 0.0
  %773 = vmatpush1.msra.mxu0 0.0
  %774 = vmatprep.subr.mxu0 0.0
  %775 = vmatpush1.msra.mxu0 0.0
  %776 = vmatprep.subr.mxu0 0.0
  %777 = vmatpush1.msra.mxu0 0.0
  %778 = vmatprep.subr.mxu0 0.0
  %779 = vmatpush1.msra.mxu0 0.0
  %780 = vmatprep.subr.mxu0 0.0
  %781 = vmatpush1.msra.mxu0 0.0
  %782 = vmatprep.subr.mxu0 0.0
  %783 = vmatpush1.msra.mxu0 0.0
  %784 = vmatprep.subr.mxu0 0.0
  %785 = vmatpush1.msra.mxu0 0.0
  %786 = vmatprep.subr.mxu0 0.0
  %787 = vmatpush1.msra.mxu0 0.0
  %788 = vmatprep.subr.mxu0 0.0
  %789 = vmatpush1.msra.mxu0 0.0
  %790 = vmatprep.subr.mxu0 0.0
  %791 = vmatpush1.msra.mxu0 0.0
  %792 = vmatprep.subr.mxu0 0.0
  %793 = vmatpush1.msra.mxu0 0.0
  %794 = vmatprep.mubr.f32.mxu0 0.0
  %795 = vmatmul.mubr.f32.gmra.mrb[0].mxu0 %v728
  %v796 = vpop.f32.mrb[0].mxu0
  %v797 = vadd.f32 0.0, %v796
  %v798 = vpop.f32.mrb[0].mxu0
  %799 = vdwg.mxu0
  %v800 = vadd.f32 %v724, %v797
  %v801 = vxor.u32 %v800, 2147483648
  %v802 = vmul.f32 %v801, 1.442695
  %v803 = vpow.pop %v802
  %v804 = vadd.f32 %v803, 1.0
  %v805 = vrcp.pop %v804
  %v806 = vmul.f32 1.0, %v805
  %v807 = vtanh.pop %v800
  %v808 = vmul.f32 %v806, %v716
  %810 = vrot.lane.b32.xlu0 %v807, 64
  %v811 = vpop.permute.xlu0 %810
  %v813 = vmul.f32 %v806, %v811
  %815 = vrot.lane.b32.xlu0 %v813, 32
  %v816 = vpop.permute.xlu0 %815
  %v818 = vadd.f32 %v808, %v816
  %v819 = vtanh.pop %v818
  %821 = vrot.lane.b32.xlu0 %v819, 64
  %v822 = vpop.permute.xlu0 %821
  %v824 = vmul.f32 %v806, %v822
  %s825 = scalar_lea.vmem [#allocation2], 56
  %v826 = vld [vmem:[%s825] sm:$0xff]
  %828 = vrot.lane.b32.xlu0 %v824, 32
  %v829 = vpop.permute.xlu0 %828
  %v830 = vsel %vm114, %v829, 0
  %832 = vmatprep.subr.mxu0 0.0
  %833 = vmatpush1.msra.mxu0 %v109
  %834 = vmatprep.subr.mxu0 0.0
  %835 = vmatpush1.msra.mxu0 %v110
  %836 = vmatprep.subr.mxu0 0.0
  %837 = vmatpush1.msra.mxu0 %v111
  %838 = vmatprep.subr.mxu0 0.0
  %839 = vmatpush1.msra.mxu0 %v112
  %840 = vmatprep.subr.mxu0 0.0
  %841 = vmatpush1.msra.mxu0 0.0
  %842 = vmatprep.subr.mxu0 0.0
  %843 = vmatpush1.msra.mxu0 0.0
  %844 = vmatprep.subr.mxu0 0.0
  %845 = vmatpush1.msra.mxu0 0.0
  %846 = vmatprep.subr.mxu0 0.0
  %847 = vmatpush1.msra.mxu0 0.0
  %848 = vmatprep.subr.mxu0 0.0
  %849 = vmatpush1.msra.mxu0 0.0
  %850 = vmatprep.subr.mxu0 0.0
  %851 = vmatpush1.msra.mxu0 0.0
  %852 = vmatprep.subr.mxu0 0.0
  %853 = vmatpush1.msra.mxu0 0.0
  %854 = vmatprep.subr.mxu0 0.0
  %855 = vmatpush1.msra.mxu0 0.0
  %856 = vmatprep.subr.mxu0 0.0
  %857 = vmatpush1.msra.mxu0 0.0
  %858 = vmatprep.subr.mxu0 0.0
  %859 = vmatpush1.msra.mxu0 0.0
  %860 = vmatprep.subr.mxu0 0.0
  %861 = vmatpush1.msra.mxu0 0.0
  %862 = vmatprep.subr.mxu0 0.0
  %863 = vmatpush1.msra.mxu0 0.0
  %864 = vmatprep.subr.mxu0 0.0
  %865 = vmatpush1.msra.mxu0 0.0
  %866 = vmatprep.subr.mxu0 0.0
  %867 = vmatpush1.msra.mxu0 0.0
  %868 = vmatprep.subr.mxu0 0.0
  %869 = vmatpush1.msra.mxu0 0.0
  %870 = vmatprep.subr.mxu0 0.0
  %871 = vmatpush1.msra.mxu0 0.0
  %872 = vmatprep.subr.mxu0 0.0
  %873 = vmatpush1.msra.mxu0 0.0
  %874 = vmatprep.subr.mxu0 0.0
  %875 = vmatpush1.msra.mxu0 0.0
  %876 = vmatprep.subr.mxu0 0.0
  %877 = vmatpush1.msra.mxu0 0.0
  %878 = vmatprep.subr.mxu0 0.0
  %879 = vmatpush1.msra.mxu0 0.0
  %880 = vmatprep.subr.mxu0 0.0
  %881 = vmatpush1.msra.mxu0 0.0
  %882 = vmatprep.subr.mxu0 0.0
  %883 = vmatpush1.msra.mxu0 0.0
  %884 = vmatprep.subr.mxu0 0.0
  %885 = vmatpush1.msra.mxu0 0.0
  %886 = vmatprep.subr.mxu0 0.0
  %887 = vmatpush1.msra.mxu0 0.0
  %888 = vmatprep.subr.mxu0 0.0
  %889 = vmatpush1.msra.mxu0 0.0
  %890 = vmatprep.subr.mxu0 0.0
  %891 = vmatpush1.msra.mxu0 0.0
  %892 = vmatprep.subr.mxu0 0.0
  %893 = vmatpush1.msra.mxu0 0.0
  %894 = vmatprep.subr.mxu0 0.0
  %895 = vmatpush1.msra.mxu0 0.0
  %896 = vmatprep.mubr.f32.mxu0 0.0
  %897 = vmatmul.mubr.f32.gmra.mrb[0].mxu0 %v830
  %v898 = vpop.f32.mrb[0].mxu0
  %v899 = vadd.f32 0.0, %v898
  %v900 = vpop.f32.mrb[0].mxu0
  %901 = vdwg.mxu0
  %v902 = vadd.f32 %v826, %v899
  %v903 = vxor.u32 %v902, 2147483648
  %v904 = vmul.f32 %v903, 1.442695
  %v905 = vpow.pop %v904
  %v906 = vadd.f32 %v905, 1.0
  %v907 = vrcp.pop %v906
  %v908 = vmul.f32 1.0, %v907
  %v909 = vtanh.pop %v902
  %v910 = vmul.f32 %v908, %v818
  %912 = vrot.lane.b32.xlu0 %v909, 64
  %v913 = vpop.permute.xlu0 %912
  %v915 = vmul.f32 %v908, %v913
  %917 = vrot.lane.b32.xlu0 %v915, 32
  %v918 = vpop.permute.xlu0 %917
  %v920 = vadd.f32 %v910, %v918
  %v921 = vtanh.pop %v920
  %923 = vrot.lane.b32.xlu0 %v921, 64
  %v924 = vpop.permute.xlu0 %923
  %v926 = vmul.f32 %v908, %v924
  %v927 = vld [vmem:[%s4] sm:$0xff]
  %v928 = vld [vmem:[%s4 + $0x8] sm:$0xff]
  %v929 = vld [vmem:[%s4 + $0x10] sm:$0xff]
  %v930 = vld [vmem:[%s4 + $0x18] sm:$0xff]
  %v931 = vld [vmem:[%s5] sm:$0x1]
  %v933 = vlaneseq
  %v934 = vshrl.u32 %v933, 7
  %v935 = vsub.s32 0, %v934
  %v936 = vrot.slane %v931, %v935
  %939 = vrot.lane.b32.xlu0 %v926, 32
  %v940 = vpop.permute.xlu0 %939
  %v941 = vsel %vm114, %v940, 0
  %943 = vmatprep.subr.mxu0 0.0
  %944 = vmatpush1.msra.mxu0 %v927
  %945 = vmatprep.subr.mxu0 0.0
  %946 = vmatpush1.msra.mxu0 %v928
  %947 = vmatprep.subr.mxu0 0.0
  %948 = vmatpush1.msra.mxu0 %v929
  %949 = vmatprep.subr.mxu0 0.0
  %950 = vmatpush1.msra.mxu0 %v930
  %951 = vmatprep.subr.mxu0 0.0
  %952 = vmatpush1.msra.mxu0 0.0
  %953 = vmatprep.subr.mxu0 0.0
  %954 = vmatpush1.msra.mxu0 0.0
  %955 = vmatprep.subr.mxu0 0.0
  %956 = vmatpush1.msra.mxu0 0.0
  %957 = vmatprep.subr.mxu0 0.0
  %958 = vmatpush1.msra.mxu0 0.0
  %959 = vmatprep.subr.mxu0 0.0
  %960 = vmatpush1.msra.mxu0 0.0
  %961 = vmatprep.subr.mxu0 0.0
  %962 = vmatpush1.msra.mxu0 0.0
  %963 = vmatprep.subr.mxu0 0.0
  %964 = vmatpush1.msra.mxu0 0.0
  %965 = vmatprep.subr.mxu0 0.0
  %966 = vmatpush1.msra.mxu0 0.0
  %967 = vmatprep.subr.mxu0 0.0
  %968 = vmatpush1.msra.mxu0 0.0
  %969 = vmatprep.subr.mxu0 0.0
  %970 = vmatpush1.msra.mxu0 0.0
  %971 = vmatprep.subr.mxu0 0.0
  %972 = vmatpush1.msra.mxu0 0.0
  %973 = vmatprep.subr.mxu0 0.0
  %974 = vmatpush1.msra.mxu0 0.0
  %975 = vmatprep.subr.mxu0 0.0
  %976 = vmatpush1.msra.mxu0 0.0
  %977 = vmatprep.subr.mxu0 0.0
  %978 = vmatpush1.msra.mxu0 0.0
  %979 = vmatprep.subr.mxu0 0.0
  %980 = vmatpush1.msra.mxu0 0.0
  %981 = vmatprep.subr.mxu0 0.0
  %982 = vmatpush1.msra.mxu0 0.0
  %983 = vmatprep.subr.mxu0 0.0
  %984 = vmatpush1.msra.mxu0 0.0
  %985 = vmatprep.subr.mxu0 0.0
  %986 = vmatpush1.msra.mxu0 0.0
  %987 = vmatprep.subr.mxu0 0.0
  %988 = vmatpush1.msra.mxu0 0.0
  %989 = vmatprep.subr.mxu0 0.0
  %990 = vmatpush1.msra.mxu0 0.0
  %991 = vmatprep.subr.mxu0 0.0
  %992 = vmatpush1.msra.mxu0 0.0
  %993 = vmatprep.subr.mxu0 0.0
  %994 = vmatpush1.msra.mxu0 0.0
  %995 = vmatprep.subr.mxu0 0.0
  %996 = vmatpush1.msra.mxu0 0.0
  %997 = vmatprep.subr.mxu0 0.0
  %998 = vmatpush1.msra.mxu0 0.0
  %999 = vmatprep.subr.mxu0 0.0
  %1000 = vmatpush1.msra.mxu0 0.0
  %1001 = vmatprep.subr.mxu0 0.0
  %1002 = vmatpush1.msra.mxu0 0.0
  %1003 = vmatprep.subr.mxu0 0.0
  %1004 = vmatpush1.msra.mxu0 0.0
  %1005 = vmatprep.subr.mxu0 0.0
  %1006 = vmatpush1.msra.mxu0 0.0
  %1007 = vmatprep.mubr.f32.mxu0 0.0
  %1008 = vmatmul.mubr.f32.gmra.mrb[0].mxu0 %v941
  %v1009 = vpop.f32.mrb[0].mxu0
  %v1010 = vadd.f32 %v936, %v1009
  %v1011 = vpop.f32.mrb[0].mxu0
  %1012 = vdwg.mxu0
  %vm1013 = vcmask 15360
  %1014 = vst.msk [vmem:[%s6] sm:$0xff] %vm1013, %v1010
  // Predicated region
  $region26: #{tpu_custom_call.1} parent=0 // pred_check
    _
  $region27: #{tpu_custom_call.1} parent=0 // pred_check_branch
    %1016 = sbr.rel (0) target = $region29
  $region28: #{tpu_custom_call.1} parent=0 // pred_region
    _
  $region29: #{tpu_custom_call.1} parent=0 // pred_fallthru
    _
  // Predicated region
  $region30: #{tpu_custom_call.1} parent=0 // pred_check
    _
  $region31: #{tpu_custom_call.1} parent=0 // pred_check_branch
    %1018 = sbr.rel (0) target = $region33
  $region32: #{tpu_custom_call.1} parent=0 // pred_region
    _
  $region33: #{tpu_custom_call.1} parent=0 // pred_fallthru
    _

</llo_original>
